<compile_context>
chip_gen: v7x
topology: tpu7x:2x2x1
jax: 0.10.0
libtpu: 0.0.40
codegen_flags: <defaults>
</compile_context>

<pallas_src>
import functools

import jax
import jax.numpy as jnp
from jax.experimental import pallas as pl
from jax.experimental.pallas import tpu as pltpu

GIVEN_ANG = 10.0   # module-level `given_ang` (!= -1 branch => ang_inc unused)
MOMENTUM = 0.1     # QC_Norm default momentum


# --------------------------------------------------------------------------
# Math helpers
# --------------------------------------------------------------------------
def _asin_f32(u):
    """float32 arcsin built only from mul/add/sqrt/where (Mosaic-safe).

    Cephes asinf minimax polynomial, |err| ~ 1e-7.  Single polynomial
    evaluation: the branch argument is selected *before* the poly.  The sqrt
    argument is clamped so |u| marginally above 1 (FP noise) degrades
    gracefully instead of producing NaN.
    # TODO(synk): replace with jnp.arcsin if/when lax.asin_p lowers on Mosaic.
    """
    half_pi = jnp.float32(jnp.pi / 2)
    a = jnp.abs(u)
    big = a > 0.5
    z = jnp.where(big, jnp.sqrt(jnp.maximum((1.0 - a) * 0.5, 0.0)), a)
    z2 = z * z
    p = jnp.float32(4.2163199048e-2)
    p = p * z2 + jnp.float32(2.4181311049e-2)
    p = p * z2 + jnp.float32(4.5470025998e-2)
    p = p * z2 + jnp.float32(7.4953002686e-2)
    p = p * z2 + jnp.float32(1.6666752422e-1)
    core = z + z * z2 * p                         # asin(z) for z in [0, 0.5]
    asin_abs = jnp.where(big, half_pi - 2.0 * core, core)
    return jnp.where(u < 0.0, -asin_abs, asin_abs)


# --------------------------------------------------------------------------
# Kernels
# --------------------------------------------------------------------------
def qc_norm_train_kernel(x_ref, rot_ref, out_ref, new_rot_ref):
    """Single-pass training kernel: whole batch resident, tiled over features."""
    half_pi = jnp.float32(jnp.pi / 2)
    ang = jnp.float32(GIVEN_ANG)
    mom = jnp.float32(MOMENTUM)
    inv_b = jnp.float32(1.0 / x_ref.shape[0])

    u = x_ref[...].astype(jnp.float32) * 2.0 - 1.0         # (B, TF); x dies here
    # Leave-one-out batch mean, rewritten so the (1,TF) part is hoisted:
    #   2*x_mean - 1 = (sum_b(u) - 1)/B - u/B
    c = (jnp.sum(u, axis=0, keepdims=True) - 1.0) * inv_b  # (1, TF)
    w = c - u * inv_b                                      # (B, TF)
    # r = (pi/2 - acos(w)) * ang == asin(w) * ang
    r = _asin_f32(w) * ang

    # EMA update, exactly as the PyTorch source:
    #   running = momentum*running + (1-momentum)*mean_b(r)
    r_mean = jnp.sum(r, axis=0, keepdims=True) * inv_b
    new_rot_ref[...] = (mom * rot_ref[...].astype(jnp.float32)
                        + (1.0 - mom) * r_mean).astype(new_rot_ref.dtype)

    # out = (cos(acos(u) + r) + 1)/2 without a second acos:
    #   cos(acos(u)+r) = u*cos(r) - sqrt(1-u^2)*sin(r),  sqrt clamped >= 0
    s = jnp.sqrt(jnp.maximum((1.0 - u) * (1.0 + u), 0.0))
    out = (u * jnp.cos(r) - s * jnp.cos(half_pi - r) + 1.0) * 0.5
    out_ref[...] = out.astype(out_ref.dtype)


def qc_norm_batch_sum_kernel(x_ref, sum_ref):
    """Two-pass training, pass 1: per-feature batch sum (accumulated over B tiles)."""
    @pl.when(pl.program_id(1) == 0)
    def _init():
        sum_ref[...] = jnp.zeros_like(sum_ref)
    sum_ref[...] += jnp.sum(x_ref[...].astype(jnp.float32), axis=0, keepdims=True)


def qc_norm_train_pass2_kernel(x_ref, sum_ref, rot_ref, out_ref, new_rot_ref, *,
                               inv_b):
    """Two-pass training, pass 2: outputs + EMA, batch tiled (arbitrary axis)."""
    half_pi = jnp.float32(jnp.pi / 2)
    ang = jnp.float32(GIVEN_ANG)
    mom = jnp.float32(MOMENTUM)
    inv_b = jnp.float32(inv_b)
    i = pl.program_id(1)                                    # batch-tile index (last axis)

    @pl.when(i == 0)
    def _init():
        new_rot_ref[...] = jnp.zeros_like(new_rot_ref)      # r-sum accumulator

    u = x_ref[...].astype(jnp.float32) * 2.0 - 1.0          # (TB, TF)
    # 2*x_mean - 1 = (2*sum_x - 1)/B - 1 - u/B  (hoisted (1,TF) part)
    c = (2.0 * sum_ref[...] - 1.0) * inv_b - 1.0
    w = c - u * inv_b
    r = _asin_f32(w) * ang
    new_rot_ref[...] += jnp.sum(r, axis=0, keepdims=True)

    s = jnp.sqrt(jnp.maximum((1.0 - u) * (1.0 + u), 0.0))
    out_ref[...] = ((u * jnp.cos(r) - s * jnp.cos(half_pi - r) + 1.0) * 0.5
                    ).astype(out_ref.dtype)

    @pl.when(i == pl.num_programs(1) - 1)
    def _finalize():
        new_rot_ref[...] = (mom * rot_ref[...].astype(jnp.float32)
                            + (1.0 - mom) * new_rot_ref[...] * inv_b)


def qc_norm_eval_kernel(x_ref, rot_ref, out_ref):
    half_pi = jnp.float32(jnp.pi / 2)
    rot = rot_ref[...].astype(jnp.float32)                  # (1, TF), broadcasts over TB
    cos_r = jnp.cos(rot)
    sin_r = jnp.cos(half_pi - rot)
    u = x_ref[...].astype(jnp.float32) * 2.0 - 1.0
    s = jnp.sqrt(jnp.maximum((1.0 - u) * (1.0 + u), 0.0))
    out_ref[...] = ((u * cos_r - s * sin_r + 1.0) * 0.5).astype(out_ref.dtype)


# --------------------------------------------------------------------------
# Generation-aware tiling
# --------------------------------------------------------------------------
def _hw_params():
    """Returns (per-block VMEM budget, vmem_limit_bytes, prefer >=2 grid steps)."""
    vmem_cap = 64 << 20          # conservative default if the query fails
    num_cores = 1
    try:
        info = pltpu.get_tpu_info()
        vmem_cap = int(getattr(info, "vmem_capacity_bytes", vmem_cap))
        num_cores = int(getattr(info, "num_cores",
                                getattr(info, "num_cores_per_chip", 1)))
    except Exception:
        pass
    # v7x-style parts (2 TensorCores / 64 MiB VMEM) want >=2 parallel steps;
    # single-TC v5e/v6e prefer one maximal block per call.
    prefer_multi = (num_cores > 1) or (vmem_cap <= (64 << 20))
    if vmem_cap >= (96 << 20):
        block_budget = 28 << 20                  # v5e / v6e (128 MiB physical)
    else:
        block_budget = 14 << 20                  # v7x (64 MiB physical)
    vmem_limit = int(min(vmem_cap * 3 // 4, 96 << 20))
    return block_budget, vmem_limit, prefer_multi


def _lane_tile_candidates(F):
    """Legal lane tiles: multiples of 128 dividing F, plus full F; descending."""
    if F % 128 != 0:
        return [F]                               # full-extent block is the only legal choice
    cands = {t for t in (4096, 2048, 1024, 512, 256, 128) if t <= F and F % t == 0}
    cands.add(F)
    return sorted(cands, reverse=True)


def _sublane_tile_candidates(B):
    """Legal batch tiles: multiples of 8 dividing B, else full B; descending."""
    cands = sorted({t for t in range(8, B + 1, 8) if B % t == 0}, reverse=True)
    return cands if cands else [B]


def _pick_tf_single_pass(F, B, x_bytes, out_bytes, budget, prefer_multi):
    """Lane tile for the batch-resident training kernel; None if nothing fits."""
    # Double-buffered (B,TF) in + out blocks, rot rows, + headroom for the f32
    # temporaries (u, r, s) that stay live at large B*TF.
    per_col = B * (2 * x_bytes + 2 * out_bytes + 8) + 16
    fits = [t for t in _lane_tile_candidates(F) if t * per_col <= budget]
    if not fits:
        return None
    if prefer_multi:
        even = [t for t in fits if F // t >= 2 and (F // t) % 2 == 0]
        multi = [t for t in fits if F // t >= 2]
        return (even or multi or fits)[0]
    return fits[0]


def _pick_bt_ft_tiles(F, B, x_bytes, out_bytes, budget, prefer_multi):
    """(TB, TF) for batch-tiled kernels (eval path and two-pass training)."""
    per_elem = 2 * x_bytes + 2 * out_bytes + 6           # + f32-temp headroom
    tf_cands = _lane_tile_candidates(F)
    tb_cands = _sublane_tile_candidates(B)
    tb, tf = tb_cands[-1], tf_cands[-1]                  # smallest (best effort)
    found = False
    for t_f in tf_cands:                                 # prefer lane-dense blocks
        for t_b in tb_cands:
            if t_b * t_f * per_elem + 24 * t_f <= budget:
                tb, tf = t_b, t_f
                found = True
                break
        if found:
            break
    if prefer_multi and (F // tf) * (B // tb) < 2:
        tb_multi = [t for t in tb_cands if B // t >= 2]
        tf_multi = [t for t in tf_cands if F // t >= 2]
        if tb_multi:
            tb = tb_multi[0]
        elif tf_multi:
            tf = tf_multi[0]
    return tb, tf


# --------------------------------------------------------------------------
# Wrapper
# --------------------------------------------------------------------------
def qc_norm_forward(x, x_running_rot, training=True, out_dtype=None,
                    block_budget_bytes=None):
    """x: (B, F) in [0, 1] (f32 or bf16); x_running_rot: (F,) float32.

    Returns (out (B, F) of out_dtype, new_running_rot (F,) float32).
    On bandwidth-bound v5e/v6e pass x as bf16 and out_dtype=jnp.bfloat16 to
    halve HBM traffic (all math stays f32 inside the kernel).
    """
    B, F = x.shape
    out_dtype = out_dtype or x.dtype
    budget, vmem_limit, prefer_multi = _hw_params()
    if block_budget_bytes is not None:
        budget = block_budget_bytes
    xb = jnp.dtype(x.dtype).itemsize
    ob = jnp.dtype(out_dtype).itemsize
    rot2d = x_running_rot.reshape(1, F).astype(jnp.float32)

    # ---------------- eval: fully elementwise, tile B and F ----------------
    if not training:
        TB, TF = _pick_bt_ft_tiles(F, B, xb, ob, budget, prefer_multi)
        grid = (B // TB, F // TF)
        out = pl.pallas_call(
            qc_norm_eval_kernel,
            out_shape=jax.ShapeDtypeStruct((B, F), out_dtype),
            grid_spec=pl.GridSpec(
                grid=grid,
                in_specs=[pl.BlockSpec((TB, TF), lambda i, j: (i, j)),
                          pl.BlockSpec((1, TF), lambda i, j: (0, j))],
                out_specs=pl.BlockSpec((TB, TF), lambda i, j: (i, j)),
            ),
            compiler_params=pltpu.CompilerParams(
                dimension_semantics=("parallel", "parallel"),
                vmem_limit_bytes=vmem_limit),
            cost_estimate=pl.CostEstimate(
                flops=int(15 * B * F),
                transcendentals=int(B * F + 2 * F),
                bytes_accessed=int(B * F * (xb + ob) + 4 * F)),
        )(x, rot2d)
        return out, x_running_rot

    # ---------------- training, single pass (batch resident) ---------------
    TF = _pick_tf_single_pass(F, B, xb, ob, budget, prefer_multi)
    if TF is not None:
        grid = (F // TF,)
        out, new_rot = pl.pallas_call(
            qc_norm_train_kernel,
            out_shape=(jax.ShapeDtypeStruct((B, F), out_dtype),
                       jax.ShapeDtypeStruct((1, F), jnp.float32)),
            grid_spec=pl.GridSpec(
                grid=grid,
                in_specs=[pl.BlockSpec((B, TF), lambda j: (0, j)),
                          pl.BlockSpec((1, TF), lambda j: (0, j))],
                out_specs=[pl.BlockSpec((B, TF), lambda j: (0, j)),
                           pl.BlockSpec((1, TF), lambda j: (0, j))],
            ),
            compiler_params=pltpu.CompilerParams(
                dimension_semantics=("parallel",),
                vmem_limit_bytes=vmem_limit),
            cost_estimate=pl.CostEstimate(
                flops=int(40 * B * F),
                transcendentals=int(3 * B * F),
                bytes_accessed=int(B * F * (xb + ob) + 8 * F)),
        )(x, rot2d)
        return out, new_rot.reshape(F)

    # ------------- training, two passes (large batch / small VMEM) ---------
    TB, TF = _pick_bt_ft_tiles(F, B, xb, ob, budget, prefer_multi)
    grid = (F // TF, B // TB)                     # reduction (batch) axis last

    x_sum = pl.pallas_call(
        qc_norm_batch_sum_kernel,
        out_shape=jax.ShapeDtypeStruct((1, F), jnp.float32),
        grid_spec=pl.GridSpec(
            grid=grid,
            in_specs=[pl.BlockSpec((TB, TF), lambda j, i: (i, j))],
            out_specs=pl.BlockSpec((1, TF), lambda j, i: (0, j)),
        ),
        compiler_params=pltpu.CompilerParams(
            dimension_semantics=("parallel", "arbitrary"),
            vmem_limit_bytes=vmem_limit),
        cost_estimate=pl.CostEstimate(
            flops=int(B * F), transcendentals=0,
            bytes_accessed=int(B * F * xb + 4 * F)),
    )(x)

    pass2 = functools.partial(qc_norm_train_pass2_kernel, inv_b=1.0 / B)
    out, new_rot = pl.pallas_call(
        pass2,
        out_shape=(jax.ShapeDtypeStruct((B, F), out_dtype),
                   jax.ShapeDtypeStruct((1, F), jnp.float32)),
        grid_spec=pl.GridSpec(
            grid=grid,
            in_specs=[pl.BlockSpec((TB, TF), lambda j, i: (i, j)),
                      pl.BlockSpec((1, TF), lambda j, i: (0, j)),
                      pl.BlockSpec((1, TF), lambda j, i: (0, j))],
            out_specs=[pl.BlockSpec((TB, TF), lambda j, i: (i, j)),
                       pl.BlockSpec((1, TF), lambda j, i: (0, j))],
        ),
        compiler_params=pltpu.CompilerParams(
            dimension_semantics=("parallel", "arbitrary"),
            vmem_limit_bytes=vmem_limit),
        cost_estimate=pl.CostEstimate(
            flops=int(40 * B * F),
            transcendentals=int(3 * B * F),
            bytes_accessed=int(B * F * (xb + ob) + 12 * F)),
    )(x, x_sum, rot2d)
    return out, new_rot.reshape(F)


# --------------------------------------------------------------------------
# Pure-JAX references (mirror the PyTorch module line by line)
# --------------------------------------------------------------------------
def qc_norm_ref(x, rot, momentum=MOMENTUM, given_ang=GIVEN_ANG):
    xt = x.T                                              # (F, B)
    n = xt.shape[-1]
    x_sum = xt.sum(-1, keepdims=True)
    x_lack_sum = x_sum - xt
    x_mean = x_lack_sum / n
    x_mean_ancle = jnp.arccos(x_mean * 2.0 - 1.0)
    x_mean_rote = (jnp.pi / 2 - x_mean_ancle) * given_ang
    x_moving_rot = x_mean_rote.sum(-1) / n
    new_rot = momentum * rot + (1.0 - momentum) * x_moving_rot
    x_ancle = jnp.arccos(xt * 2.0 - 1.0)
    out = ((jnp.cos(x_ancle + x_mean_rote) + 1.0) / 2.0).T
    return out, new_rot


def qc_norm_eval_ref(x, rot):
    xt = x.T
    return ((jnp.cos(jnp.arccos(xt * 2.0 - 1.0) + rot[:, None]) + 1.0) / 2.0).T


# --------------------------------------------------------------------------
if __name__ == "__main__":
    key = jax.random.PRNGKey(0)
    kx, kx2, kx3 = jax.random.split(key, 3)

    # ---- Test 1: single-pass training + eval (batch=8, features=256) ----
    B, F = 8, 256
    x = jax.random.uniform(kx, (B, F), dtype=jnp.float32)   # QC_Norm inputs in [0,1]
    running_rot = jnp.zeros((F,), jnp.float32)               # torch.zeros(num_features)
    # ang_inc = ones(1)*10 exists in the module but is unused (given_ang != -1 branch)

    out, new_rot = qc_norm_forward(x, running_rot, training=True)
    out_eval, _ = qc_norm_forward(x, new_rot, training=False)
    jax.block_until_ready((out, new_rot, out_eval))

    out_r, rot_r = qc_norm_ref(x, running_rot)
    out_eval_r = qc_norm_eval_ref(x, rot_r)
    assert jnp.allclose(out, out_r, atol=2e-3, rtol=2e-3), "train output mismatch"
    assert jnp.allclose(new_rot, rot_r, atol=2e-3, rtol=2e-3), "running_rot mismatch"
    assert jnp.allclose(out_eval, out_eval_r, atol=2e-3, rtol=2e-3), "eval output mismatch"

    # ---- Test 2: two-pass training path (forced via a tiny block budget) ----
    B2, F2 = 32, 256
    x2 = jax.random.uniform(kx2, (B2, F2), dtype=jnp.float32)
    rot2 = jnp.zeros((F2,), jnp.float32)
    out2, new_rot2 = qc_norm_forward(x2, rot2, training=True,
                                     block_budget_bytes=1 << 16)
    jax.block_until_ready((out2, new_rot2))
    out2_r, rot2_r = qc_norm_ref(x2, rot2)
    assert jnp.allclose(out2, out2_r, atol=2e-3, rtol=2e-3), "two-pass output mismatch"
    assert jnp.allclose(new_rot2, rot2_r, atol=2e-3, rtol=2e-3), "two-pass rot mismatch"

    # ---- Test 3: small non-128-multiple feature count (full-extent blocks) ----
    B3, F3 = 6, 16
    x3 = jax.random.uniform(jax.random.PRNGKey(1), (B3, F3), dtype=jnp.float32)
    rot3 = jnp.zeros((F3,), jnp.float32)
    out3, new_rot3 = qc_norm_forward(x3, rot3, training=True)
    out3e, _ = qc_norm_forward(x3, new_rot3, training=False)
    jax.block_until_ready((out3, new_rot3, out3e))
    out3_r, rot3_r = qc_norm_ref(x3, rot3)
    out3e_r = qc_norm_eval_ref(x3, rot3_r)
    assert jnp.allclose(out3, out3_r, atol=2e-3, rtol=2e-3), "small-F train mismatch"
    assert jnp.allclose(new_rot3, rot3_r, atol=2e-3, rtol=2e-3), "small-F rot mismatch"
    assert jnp.allclose(out3e, out3e_r, atol=2e-3, rtol=2e-3), "small-F eval mismatch"

    # ---- Test 4: bf16 I/O path (recommended on bandwidth-bound v5e/v6e) ----
    B4, F4 = 16, 256
    x4 = jax.random.uniform(kx3, (B4, F4), dtype=jnp.float32).astype(jnp.bfloat16)
    rot4 = jnp.zeros((F4,), jnp.float32)
    out4, new_rot4 = qc_norm_forward(x4, rot4, training=True, out_dtype=jnp.bfloat16)
    jax.block_until_ready((out4, new_rot4))
    out4_r, rot4_r = qc_norm_ref(x4.astype(jnp.float32), rot4)
    assert jnp.allclose(out4.astype(jnp.float32), out4_r, atol=1e-2, rtol=1e-2), \
        "bf16 train output mismatch"
    assert jnp.allclose(new_rot4, rot4_r, atol=1e-2, rtol=1e-2), "bf16 rot mismatch"

    print("KERNEL_OK")
</pallas_src>

<mosaic_0001>
module attributes {stable_mosaic.version = 11 : i64} {
  func.func @qc_norm_train_kernel(%arg0: i32, %arg1: memref<8x128xf32, #tpu.memory_space<vmem>>, %arg2: memref<1x128xf32, #tpu.memory_space<vmem>>, %arg3: memref<8x128xf32, #tpu.memory_space<vmem>>, %arg4: memref<1x128xf32, #tpu.memory_space<vmem>>) attributes {dimension_semantics = [#tpu.dimension_semantics<parallel>], iteration_bounds = array<i64: 2>, scalar_prefetch = 0 : i64, scratch_operands = 0 : i64, tpu.core_type = #tpu.core_type<tc>, window_params = [{transform_indices = @transform_0, window_bounds = array<i64: 8, 128>}, {transform_indices = @transform_1, window_bounds = array<i64: 1, 128>}, {transform_indices = @transform_2, window_bounds = array<i64: 8, 128>}, {transform_indices = @transform_3, window_bounds = array<i64: 1, 128>}]} {
    %c0 = arith.constant 0 : index
    %c0_0 = arith.constant 0 : index
    %0 = vector.load %arg1[%c0, %c0_0] : memref<8x128xf32, #tpu.memory_space<vmem>>, vector<8x128xf32>
    %cst = arith.constant 2.000000e+00 : f32
    %1 = vector.broadcast %cst : f32 to vector<8x128xf32>
    %2 = arith.mulf %0, %1 : vector<8x128xf32>
    %cst_1 = arith.constant 1.000000e+00 : f32
    %3 = vector.broadcast %cst_1 : f32 to vector<8x128xf32>
    %4 = arith.subf %2, %3 : vector<8x128xf32>
    %cst_2 = arith.constant dense<0.000000e+00> : vector<128xf32>
    %5 = vector.multi_reduction <add>, %4, %cst_2 [0] : vector<8x128xf32> to vector<128xf32>
    %6 = vector.shape_cast %5 : vector<128xf32> to vector<1x128xf32>
    %cst_3 = arith.constant 1.000000e+00 : f32
    %7 = vector.broadcast %cst_3 : f32 to vector<1x128xf32>
    %8 = arith.subf %6, %7 : vector<1x128xf32>
    %cst_4 = arith.constant 1.250000e-01 : f32
    %9 = vector.broadcast %cst_4 : f32 to vector<1x128xf32>
    %10 = arith.mulf %8, %9 : vector<1x128xf32>
    %cst_5 = arith.constant 1.250000e-01 : f32
    %11 = vector.broadcast %cst_5 : f32 to vector<8x128xf32>
    %12 = arith.mulf %4, %11 : vector<8x128xf32>
    %13 = vector.broadcast %10 : vector<1x128xf32> to vector<8x128xf32>
    %14 = arith.subf %13, %12 : vector<8x128xf32>
    %15 = math.absf %14 : vector<8x128xf32>
    %cst_6 = arith.constant 5.000000e-01 : f32
    %16 = vector.broadcast %cst_6 : f32 to vector<8x128xf32>
    %17 = arith.cmpf ogt, %15, %16 : vector<8x128xf32>
    %cst_7 = arith.constant 1.000000e+00 : f32
    %18 = vector.broadcast %cst_7 : f32 to vector<8x128xf32>
    %19 = arith.subf %18, %15 : vector<8x128xf32>
    %cst_8 = arith.constant 5.000000e-01 : f32
    %20 = vector.broadcast %cst_8 : f32 to vector<8x128xf32>
    %21 = arith.mulf %19, %20 : vector<8x128xf32>
    %cst_9 = arith.constant 0.000000e+00 : f32
    %22 = vector.broadcast %cst_9 : f32 to vector<8x128xf32>
    %23 = arith.maximumf %21, %22 : vector<8x128xf32>
    %24 = math.sqrt %23 : vector<8x128xf32>
    %25 = arith.select %17, %24, %15 : vector<8x128xi1>, vector<8x128xf32>
    %26 = arith.mulf %25, %25 : vector<8x128xf32>
    %cst_10 = arith.constant 4.216320e-02 : f32
    %27 = vector.broadcast %cst_10 : f32 to vector<8x128xf32>
    %28 = arith.mulf %27, %26 : vector<8x128xf32>
    %cst_11 = arith.constant 0.024181312 : f32
    %29 = vector.broadcast %cst_11 : f32 to vector<8x128xf32>
    %30 = arith.addf %28, %29 : vector<8x128xf32>
    %31 = arith.mulf %30, %26 : vector<8x128xf32>
    %cst_12 = arith.constant 0.0454700254 : f32
    %32 = vector.broadcast %cst_12 : f32 to vector<8x128xf32>
    %33 = arith.addf %31, %32 : vector<8x128xf32>
    %34 = arith.mulf %33, %26 : vector<8x128xf32>
    %cst_13 = arith.constant 0.0749530047 : f32
    %35 = vector.broadcast %cst_13 : f32 to vector<8x128xf32>
    %36 = arith.addf %34, %35 : vector<8x128xf32>
    %37 = arith.mulf %36, %26 : vector<8x128xf32>
    %cst_14 = arith.constant 0.166667521 : f32
    %38 = vector.broadcast %cst_14 : f32 to vector<8x128xf32>
    %39 = arith.addf %37, %38 : vector<8x128xf32>
    %40 = arith.mulf %25, %26 : vector<8x128xf32>
    %41 = arith.mulf %40, %39 : vector<8x128xf32>
    %42 = arith.addf %25, %41 : vector<8x128xf32>
    %cst_15 = arith.constant 2.000000e+00 : f32
    %43 = vector.broadcast %cst_15 : f32 to vector<8x128xf32>
    %44 = arith.mulf %43, %42 : vector<8x128xf32>
    %cst_16 = arith.constant 1.57079637 : f32
    %45 = vector.broadcast %cst_16 : f32 to vector<8x128xf32>
    %46 = arith.subf %45, %44 : vector<8x128xf32>
    %47 = arith.select %17, %46, %42 : vector<8x128xi1>, vector<8x128xf32>
    %cst_17 = arith.constant 0.000000e+00 : f32
    %48 = vector.broadcast %cst_17 : f32 to vector<8x128xf32>
    %49 = arith.cmpf olt, %14, %48 : vector<8x128xf32>
    %cst_18 = arith.constant 0.000000e+00 : f32
    %50 = vector.broadcast %cst_18 : f32 to vector<8x128xf32>
    %51 = arith.subf %50, %47 : vector<8x128xf32>
    %52 = arith.select %49, %51, %47 : vector<8x128xi1>, vector<8x128xf32>
    %cst_19 = arith.constant 1.000000e+01 : f32
    %53 = vector.broadcast %cst_19 : f32 to vector<8x128xf32>
    %54 = arith.mulf %52, %53 : vector<8x128xf32>
    %cst_20 = arith.constant dense<0.000000e+00> : vector<128xf32>
    %55 = vector.multi_reduction <add>, %54, %cst_20 [0] : vector<8x128xf32> to vector<128xf32>
    %56 = vector.shape_cast %55 : vector<128xf32> to vector<1x128xf32>
    %cst_21 = arith.constant 1.250000e-01 : f32
    %57 = vector.broadcast %cst_21 : f32 to vector<1x128xf32>
    %58 = arith.mulf %56, %57 : vector<1x128xf32>
    %c0_22 = arith.constant 0 : index
    %c0_23 = arith.constant 0 : index
    %59 = vector.load %arg2[%c0_22, %c0_23] : memref<1x128xf32, #tpu.memory_space<vmem>>, vector<1x128xf32>
    %cst_24 = arith.constant 1.000000e-01 : f32
    %60 = vector.broadcast %cst_24 : f32 to vector<1x128xf32>
    %61 = arith.mulf %60, %59 : vector<1x128xf32>
    %cst_25 = arith.constant 1.000000e+00 : f32
    %cst_26 = arith.constant 1.000000e-01 : f32
    %62 = arith.subf %cst_25, %cst_26 : f32
    %63 = vector.broadcast %62 : f32 to vector<1x128xf32>
    %64 = arith.mulf %63, %58 : vector<1x128xf32>
    %65 = arith.addf %61, %64 : vector<1x128xf32>
    %c0_27 = arith.constant 0 : index
    %c0_28 = arith.constant 0 : index
    %66 = vector.load %arg4[%c0_27, %c0_28] : memref<1x128xf32, #tpu.memory_space<vmem>>, vector<1x128xf32>
    tpu.vector_store %arg4[%c0_27, %c0_28], %65 {strides = array<i32>} : memref<1x128xf32, #tpu.memory_space<vmem>>, vector<1x128xf32>,
    %cst_29 = arith.constant 1.000000e+00 : f32
    %67 = vector.broadcast %cst_29 : f32 to vector<8x128xf32>
    %68 = arith.subf %67, %4 : vector<8x128xf32>
    %cst_30 = arith.constant 1.000000e+00 : f32
    %69 = vector.broadcast %cst_30 : f32 to vector<8x128xf32>
    %70 = arith.addf %69, %4 : vector<8x128xf32>
    %71 = arith.mulf %68, %70 : vector<8x128xf32>
    %cst_31 = arith.constant 0.000000e+00 : f32
    %72 = vector.broadcast %cst_31 : f32 to vector<8x128xf32>
    %73 = arith.maximumf %71, %72 : vector<8x128xf32>
    %74 = math.sqrt %73 : vector<8x128xf32>
    %75 = math.cos %54 : vector<8x128xf32>
    %76 = arith.mulf %4, %75 : vector<8x128xf32>
    %cst_32 = arith.constant 1.57079637 : f32
    %77 = vector.broadcast %cst_32 : f32 to vector<8x128xf32>
    %78 = arith.subf %77, %54 : vector<8x128xf32>
    %79 = math.cos %78 : vector<8x128xf32>
    %80 = arith.mulf %74, %79 : vector<8x128xf32>
    %81 = arith.subf %76, %80 : vector<8x128xf32>
    %cst_33 = arith.constant 1.000000e+00 : f32
    %82 = vector.broadcast %cst_33 : f32 to vector<8x128xf32>
    %83 = arith.addf %81, %82 : vector<8x128xf32>
    %cst_34 = arith.constant 5.000000e-01 : f32
    %84 = vector.broadcast %cst_34 : f32 to vector<8x128xf32>
    %85 = arith.mulf %83, %84 : vector<8x128xf32>
    %c0_35 = arith.constant 0 : index
    %c0_36 = arith.constant 0 : index
    %86 = vector.load %arg3[%c0_35, %c0_36] : memref<8x128xf32, #tpu.memory_space<vmem>>, vector<8x128xf32>
    tpu.vector_store %arg3[%c0_35, %c0_36], %85 {strides = array<i32>} : memref<8x128xf32, #tpu.memory_space<vmem>>, vector<8x128xf32>,
    return
  }
  func.func @transform_0(%arg0: i32) -> (i32, i32) {
    %c0_i32 = arith.constant 0 : i32
    %c0_i32_0 = arith.constant 0 : i32
    return %c0_i32, %arg0 : i32, i32
  }
  func.func @transform_1(%arg0: i32) -> (i32, i32) {
    %c0_i32 = arith.constant 0 : i32
    %c0_i32_0 = arith.constant 0 : i32
    return %c0_i32, %arg0 : i32, i32
  }
  func.func @transform_2(%arg0: i32) -> (i32, i32) {
    %c0_i32 = arith.constant 0 : i32
    %c0_i32_0 = arith.constant 0 : i32
    return %c0_i32, %arg0 : i32, i32
  }
  func.func @transform_3(%arg0: i32) -> (i32, i32) {
    %c0_i32 = arith.constant 0 : i32
    %c0_i32_0 = arith.constant 0 : i32
    return %c0_i32, %arg0 : i32, i32
  }
}

</mosaic_0001>

<llo_original>
// kernel: tpu_custom_call.1
$region0: #{tpu_custom_call.1}
  #allocation0 [shape = 'u32[]', space=smem, size = 0x4, offset = 0x4, fixed_abs, tag = 'smem constant byte address 0x4 - core index']
  #allocation1 [shape = 'u32[144,128]{1,0:T(1,128)}', space=vmem, size = 0x12000, scoped, tag = 'internal scratch']
  %s0 = inlined_call_operand.hbm [shape: f32[8,256], index: 0, kind: input, shape index: {}]
  %s1 = inlined_call_operand.vmem [shape: f32[1,256], index: 1, kind: input, shape index: {}]
  %s2 = inlined_call_operand.hbm [shape: f32[8,256], index: 2, kind: output, shape index: {0}]
  %s3 = inlined_call_operand.hbm [shape: f32[1,256], index: 3, kind: output, shape index: {1}]
  %4 = xla_tuple %s2, %s3
  %s5 = sld [smem:[#allocation0]]
  $region53: #{tpu_custom_call.1} parent=0
    _
  %s7 = ssub.s32 1, %s5
  %s8 = scalar_select 0, %s7, %s5
  $region1: #{tpu_custom_call.1} parent=0
    #allocation2 [shape = 'u8[8192]{0}', space=vmem, size = 0x2000, scoped, tag = 'input window, operand 0']
    #allocation3 [shape = 's32[2]{0}', space=sflag, size = 0x8, scoped, tag = 'scoped memory for tpu_custom_call.1']
    #allocation4 [shape = 's32[2]{0}', space=sflag, size = 0x8, scoped, tag = 'scoped memory for tpu_custom_call.1']
    #allocation5 [shape = 'u8[8192]{0}', space=vmem, size = 0x2000, scoped, tag = 'output window, operand 0']
    #allocation6 [shape = 'u8[1024]{0}', space=vmem, size = 0x400, scoped, tag = 'output window, operand 1']
    #allocation7 [shape = 's32[2]{0}', space=sflag, size = 0x8, scoped, tag = 'scoped memory for tpu_custom_call.1']
    %9 = vsyncpa [#allocation3], 0
    %s10 = scalar_lea.sflag [#allocation3], 1
    %11 = vsyncpa %s10, 0
    %12 = vsyncpa [#allocation4], 0
    %s13 = scalar_lea.sflag [#allocation4], 1
    %14 = vsyncpa %s13, 0
    %15 = vsyncpa [#allocation7], 0
    %s16 = scalar_lea.sflag [#allocation7], 1
    %17 = vsyncpa %s16, 0
    loop: start=0, step=1, limit=4
    $region2: #{tpu_custom_call.1} parent=1 // loop_pre_header
      _
    $region3: #{tpu_custom_call.1} parent=1 // loop_header
      %s19 = sphi 0, %s23
      %p20 = scmp.ge.s32.totalorder %s19, 4
      %s29 = sphi 0, %s31
      %s32 = sphi 0, %s29
      %s33 = sphi 0, %s32
      %s49 = sphi 0, %s33
      %s55 = sphi 0, %s57
      %s58 = sphi 0, %s55
      %s59 = sphi 0, %s58
      %s75 = sphi 0, %s59
      %s81 = sphi 0, %s83
      %s84 = sphi 0, %s81
      %s85 = sphi 0, %s84
      %s101 = sphi 0, %s85
      %s107 = sphi 0, %s109
      %s110 = sphi 0, %s107
      %s111 = sphi 0, %s110
      %s127 = sphi 0, %s111
    $region4: #{tpu_custom_call.1} parent=1 // loop_header_branch
      %22 = sbr.rel (%p20) target = $region8
    $region5: #{tpu_custom_call.1} parent=1 // loop_body
      %s24 = ssub.s32 %s19, 1
      %s25 = ssub.s32 %s19, 2
      %s26 = sadd.s32 %s19, 1
      %s27 = ssub.s32 %s19, %s26
      %p28 = scmp.eq.s32.totalorder %s27, 0
      %s30 = sadd.s32 %s29, 1
      %s31 = scalar_select %p28, %s29, %s30
      %p34 = pneg %p28
      %p35 = scmp.eq.s32.totalorder %s19, 1
      %p36 = por %p34, %p35
      %p37 = scmp.ne.s32.totalorder %s29, %s32
      %p38 = scmp.eq.s32.totalorder %s19, 0
      %p39 = por %p37, %p38
      %p40 = scmp.ne.s32.totalorder %s29, %s32
      %p41 = scmp.eq.s32.totalorder %s24, 1
      %p42 = por %p40, %p41
      %p43 = scmp.ne.s32.totalorder %s32, %s33
      %p44 = scmp.eq.s32.totalorder %s24, 0
      %p45 = por %p43, %p44
      %p46 = scmp.ne.s32.totalorder %s32, %s33
      %p47 = scmp.eq.s32.totalorder %s25, 1
      %p48 = por %p46, %p47
      %p50 = scmp.ne.s32.totalorder %s33, %s49
      %p51 = scmp.eq.s32.totalorder %s25, 0
      %p52 = por %p50, %p51
      %s53 = ssub.s32 %s19, %s26
      %p54 = scmp.eq.s32.totalorder %s53, 0
      %s56 = sadd.s32 %s55, 1
      %s57 = scalar_select %p54, %s55, %s56
      %p60 = pneg %p54
      %p61 = scmp.eq.s32.totalorder %s19, 1
      %p62 = por %p60, %p61
      %p63 = scmp.ne.s32.totalorder %s55, %s58
      %p64 = scmp.eq.s32.totalorder %s19, 0
      %p65 = por %p63, %p64
      %p66 = scmp.ne.s32.totalorder %s55, %s58
      %p67 = scmp.eq.s32.totalorder %s24, 1
      %p68 = por %p66, %p67
      %p69 = scmp.ne.s32.totalorder %s58, %s59
      %p70 = scmp.eq.s32.totalorder %s24, 0
      %p71 = por %p69, %p70
      %p72 = scmp.ne.s32.totalorder %s58, %s59
      %p73 = scmp.eq.s32.totalorder %s25, 1
      %p74 = por %p72, %p73
      %p76 = scmp.ne.s32.totalorder %s59, %s75
      %p77 = scmp.eq.s32.totalorder %s25, 0
      %p78 = por %p76, %p77
      %s79 = ssub.s32 %s19, %s26
      %p80 = scmp.eq.s32.totalorder %s79, 0
      %s82 = sadd.s32 %s81, 1
      %s83 = scalar_select %p80, %s81, %s82
      %p86 = pneg %p80
      %p87 = scmp.eq.s32.totalorder %s19, 1
      %p88 = por %p86, %p87
      %p89 = scmp.ne.s32.totalorder %s81, %s84
      %p90 = scmp.eq.s32.totalorder %s19, 0
      %p91 = por %p89, %p90
      %p92 = scmp.ne.s32.totalorder %s81, %s84
      %p93 = scmp.eq.s32.totalorder %s24, 1
      %p94 = por %p92, %p93
      %p95 = scmp.ne.s32.totalorder %s84, %s85
      %p96 = scmp.eq.s32.totalorder %s24, 0
      %p97 = por %p95, %p96
      %p98 = scmp.ne.s32.totalorder %s84, %s85
      %p99 = scmp.eq.s32.totalorder %s25, 1
      %p100 = por %p98, %p99
      %p102 = scmp.ne.s32.totalorder %s85, %s101
      %p103 = scmp.eq.s32.totalorder %s25, 0
      %p104 = por %p102, %p103
      %s105 = ssub.s32 %s19, %s26
      %p106 = scmp.eq.s32.totalorder %s105, 0
      %s108 = sadd.s32 %s107, 1
      %s109 = scalar_select %p106, %s107, %s108
      %p112 = pneg %p106
      %p113 = scmp.eq.s32.totalorder %s19, 1
      %p114 = por %p112, %p113
      %p115 = scmp.ne.s32.totalorder %s107, %s110
      %p116 = scmp.eq.s32.totalorder %s19, 0
      %p117 = por %p115, %p116
      %p118 = scmp.ne.s32.totalorder %s107, %s110
      %p119 = scmp.eq.s32.totalorder %s24, 1
      %p120 = por %p118, %p119
      %p121 = scmp.ne.s32.totalorder %s110, %s111
      %p122 = scmp.eq.s32.totalorder %s24, 0
      %p123 = por %p121, %p122
      %p124 = scmp.ne.s32.totalorder %s110, %s111
      %p125 = scmp.eq.s32.totalorder %s25, 1
      %p126 = por %p124, %p125
      %p128 = scmp.ne.s32.totalorder %s111, %s127
      %p129 = scmp.eq.s32.totalorder %s25, 0
      %p130 = por %p128, %p129
      %p131 = scmp.le.s32.totalorder 1, %s19
      %p132 = scmp.lt.s32.totalorder %s19, 3
      %p133 = pnand %p131, %p132
      %p134 = pneg %p133
      // Predicated region
      $region9: #{tpu_custom_call.1} parent=5 // pred_check
        _
      $region10: #{tpu_custom_call.1} parent=5 // pred_check_branch
        %136 = sbr.rel (%p133) target = $region12
      $region11: #{tpu_custom_call.1} parent=5 // pred_region
        %s137 = ssub.s32 %s19, 1
      $region12: #{tpu_custom_call.1} parent=5 // pred_fallthru
        _
      %p138 = scmp.lt.s32.totalorder %s19, 2
      // Predicated region
      $region13: #{tpu_custom_call.1} parent=5 // pred_check
        %p139 = pneg %p138
      $region14: #{tpu_custom_call.1} parent=5 // pred_check_branch
        %141 = sbr.rel (%p139) target = $region16
      $region15: #{tpu_custom_call.1} parent=5 // pred_region
        // Predicated region
        $region17: #{tpu_custom_call.1} parent=15 // pred_check
          %p142 = pneg %p39
        $region18: #{tpu_custom_call.1} parent=15 // pred_check_branch
          %144 = sbr.rel (%p142) target = $region20
        $region19: #{tpu_custom_call.1} parent=15 // pred_region
          %s145 = sand.u32 %s29, 1
          %s146 = scalar_lea.sflag [#allocation3], %s145
          %s147 = sand.u32 %s29, 1
          %s148 = smul.addr %s147, 8
          %s149 = scalar_lea.vmem [#allocation2], %s148
          %s151 = ssub.s32 128, 128
          %152 = vsyncadd %s146, %s151
          %s153 = smul.addr %s19, 128
          %s154 = scalar_lea.hbm %s0, %s153
          %s156 = sshll.u32 %s149, 4
          %s157 = int_to_ptr.vmem [resolvable:$true] %s156
          %159 = dma.hbm_to_vmem [thread:$0]  %s154, 128, %s157, %s146
        $region20: #{tpu_custom_call.1} parent=15 // pred_fallthru
          _
        // Predicated region
        $region21: #{tpu_custom_call.1} parent=15 // pred_check
          %p160 = pneg %p65
        $region22: #{tpu_custom_call.1} parent=15 // pred_check_branch
          %162 = sbr.rel (%p160) target = $region24
        $region23: #{tpu_custom_call.1} parent=15 // pred_region
          %p163 = scmp.lt.s32.totalorder %s19, 1
          %s164 = scalar_select %p163, %s19, 1
          %s165 = scalar_lea.vmem %s1, %s164
        $region24: #{tpu_custom_call.1} parent=15 // pred_fallthru
          _
      $region16: #{tpu_custom_call.1} parent=5 // pred_fallthru
        _
      %p166 = scmp.le.s32.totalorder 1, %s19
      %p167 = scmp.lt.s32.totalorder %s19, 3
      %p168 = pnand %p166, %p167
      %p169 = pneg %p168
      // Predicated region
      $region25: #{tpu_custom_call.1} parent=5 // pred_check
        _
      $region26: #{tpu_custom_call.1} parent=5 // pred_check_branch
        %171 = sbr.rel (%p168) target = $region28
      $region27: #{tpu_custom_call.1} parent=5 // pred_region
        %s172 = ssub.s32 %s19, 1
        %s173 = sand.u32 %s32, 1
        %s174 = scalar_lea.sflag [#allocation3], %s173
        %s175 = sand.u32 %s32, 1
        %s176 = smul.addr %s175, 8
        %s177 = scalar_lea.vmem [#allocation2], %s176
        // Predicated region
        $region29: #{tpu_custom_call.1} parent=27 // pred_check
          %p178 = pneg %p45
        $region30: #{tpu_custom_call.1} parent=27 // pred_check_branch
          %180 = sbr.rel (%p178) target = $region32
        $region31: #{tpu_custom_call.1} parent=27 // pred_region
          %181 = dma.done %s174, 128
        $region32: #{tpu_custom_call.1} parent=27 // pred_fallthru
          _
        %s182 = sand.u32 %s32, 1
        %s183 = scalar_lea.sflag [#allocation3], %s182
        %s184 = sand.u32 %s32, 1
        %s185 = smul.addr %s184, 8
        %s186 = scalar_lea.vmem [#allocation2], %s185
        %p187 = pneg %p45
        %p188 = pneg %p42
        %p189 = scmp.lt.s32.totalorder %s24, 1
        %s190 = scalar_select %p189, %s24, 1
        %s191 = scalar_lea.vmem %s1, %s190
        %p192 = pneg %p71
        %p193 = pneg %p68
        %p194 = pneg %p97
        %p195 = pneg %p94
        %s196 = sand.u32 %s84, 1
        %s197 = scalar_lea.sflag [#allocation4], %s196
        %s198 = sand.u32 %s84, 1
        %s199 = smul.addr %s198, 8
        %s200 = scalar_lea.vmem [#allocation5], %s199
        %p201 = pneg %p123
        %p202 = pneg %p120
        %s203 = sand.u32 %s110, 1
        %s204 = scalar_lea.sflag [#allocation7], %s203
        %s205 = sand.u32 %s110, 1
        %s206 = scalar_lea.vmem [#allocation6], %s205
        %p207 = scmp.lt.s32.totalorder %s24, 1
        %s208 = scalar_select %p207, %s24, 1
        %s209 = scalar_lea.vmem %s1, %s208
        %v210 = vld [vmem:[%s177] sm:$0xff]
        %v211 = vmul.f32 %v210, 2.0
        %v212 = vsub.f32 %v211, 1.0
        %v213 = vrot.slane %v212, 4
        %v214 = vadd.f32 %v212, %v213
        %v215 = vrot.slane %v214, 2
        %v216 = vadd.f32 %v214, %v215
        %v217 = vrot.slane %v216, 1
        %v218 = vadd.f32 %v216, %v217
        %v219 = vsub.f32 %v218, 1.0
        %v220 = vmul.f32 %v219, 0.125
        %v221 = vmul.f32 %v212, 0.125
        %v222 = vsub.f32 %v220, %v221
        %v223 = vand.u32 2147483647, %v222
        %vm224 = vcmp.gt.f32.partialorder %v223, 0.5
        %v225 = vsub.f32 1.0, %v223
        %v226 = vmul.f32 %v225, 0.5
        %v227 = vmax.f32 %v226, 0.0
        %v228 = vrsqrt.pop %v227
        %v229 = vmul.f32 %v227, %v228
        %vm230 = vcmp.eq.f32.partialorder %v227, inf
        %v231 = vsel %vm230, %v227, %v229
        %vm232 = vcmp.eq.f32.partialorder %v227, 0.0
        %v233 = vand.u32 %v227, 2147483648
        %v234 = vsel %vm232, %v233, %v231
        %v235 = vsel %vm224, %v234, %v223
        %v236 = vmul.f32 %v235, %v235
        %v237 = vmul.f32 %v236, 0.0421632
        %v238 = vadd.f32 %v237, 0.024181312
        %v239 = vmul.f32 %v238, %v236
        %v240 = vadd.f32 %v239, 0.045470025
        %v241 = vmul.f32 %v240, %v236
        %v242 = vadd.f32 %v241, 0.074953005
        %v243 = vmul.f32 %v242, %v236
        %v244 = vadd.f32 %v243, 0.16666752
        %v245 = vmul.f32 %v235, %v236
        %v246 = vmul.f32 %v245, %v244
        %v247 = vadd.f32 %v235, %v246
        %v248 = vmul.f32 %v247, 2.0
        %v249 = vsub.f32 1.5707964, %v248
        %v250 = vsel %vm224, %v249, %v247
        %vm251 = vcmp.lt.f32.partialorder %v222, 0.0
        %v252 = vsub.f32 0.0, %v250
        %v253 = vsel %vm251, %v252, %v250
        %v254 = vmul.f32 %v253, 10.0
        %v255 = vrot.slane %v254, 4
        %v256 = vadd.f32 %v254, %v255
        %v257 = vrot.slane %v256, 2
        %v258 = vadd.f32 %v256, %v257
        %v259 = vrot.slane %v258, 1
        %v260 = vadd.f32 %v258, %v259
        %v261 = vmul.f32 %v260, 0.125
        %v262 = vld [vmem:[%s209] sm:$0x1]
        %v263 = vmul.f32 %v262, 0.1
        %v264 = vmul.f32 %v261, 0.9
        %v265 = vadd.f32 %v263, %v264
        %266 = vst [vmem:[%s206] sm:$0x1] %v265
        %v267 = vsub.f32 1.0, %v212
        %v268 = vadd.f32 %v212, 1.0
        %v269 = vmul.f32 %v267, %v268
        %v270 = vmax.f32 %v269, 0.0
        %v271 = vrsqrt.pop %v270
        %v272 = vmul.f32 %v270, %v271
        %vm273 = vcmp.eq.f32.partialorder %v270, inf
        %v274 = vsel %vm273, %v270, %v272
        %vm275 = vcmp.eq.f32.partialorder %v270, 0.0
        %v276 = vand.u32 %v270, 2147483648
        %v277 = vsel %vm275, %v276, %v274
        %v278 = vand.u32 2147483647, %v254
        %vm279 = vcmp.le.f32.partialorder %v278, 0.7853982
        %vm280 = vcmp.lt.s32.totalorder %v254, 0
        %v281 = vand.u32 %v254, 2139095040
        %v282 = vshrl.u32 %v281, 23
        %v283 = vsub.s32 %v282, 127
        %v284 = vand.u32 2147483647, %v254
        %v285 = vand.u32 %v284, 8388607
        %v286 = vor.u32 %v285, 8388608
        %v287 = vsub.s32 0, %v286
        %v288 = vadd.s32 %v283, 1
        %vm289 = vcmp.gt.s32.totalorder %v288, 0
        %v290 = vsel %vm289, %v288, 0
        %v291 = vshrl.u32 %v290, 5
        %v292 = vand.u32 %v290, 31
        %v293 = vsub.s32 32, %v292
        %v294 = vshrl.u32 683565275, %v293
        %v295 = vshll.u32 683565275, %v292
        %v296 = vshrl.u32 2475754826, %v293
        %v297 = vor.u32 %v295, %v296
        %v298 = vshll.u32 2475754826, %v292
        %v299 = vshrl.u32 2131351028, %v293
        %v300 = vor.u32 %v298, %v299
        %v301 = vshll.u32 2131351028, %v292
        %v302 = vshrl.u32 2102212464, %v293
        %v303 = vor.u32 %v301, %v302
        %v304 = vshll.u32 2102212464, %v292
        %v305 = vshrl.u32 920167782, %v293
        %v306 = vor.u32 %v304, %v305
        %v307 = vshll.u32 920167782, %v292
        %v308 = vshrl.u32 1326507024, %v293
        %v309 = vor.u32 %v307, %v308
        %vm310 = vcmp.lt.s32.totalorder %v291, 1
        %vm311 = vcmp.lt.s32.totalorder %v291, 2
        %vm312 = vcmp.lt.s32.totalorder %v291, 3
        %vm313 = vcmp.lt.s32.totalorder %v291, 4
        %v314 = vsel %vm310, %v294, %v297
        %v315 = vsel %vm313, %v303, 2102212464
        %v316 = vsel %vm312, %v300, %v315
        %v317 = vsel %vm311, %v314, %v316
        %v318 = vsel %vm310, %v297, %v300
        %v319 = vsel %vm313, %v306, 920167782
        %v320 = vsel %vm312, %v303, %v319
        %v321 = vsel %vm311, %v318, %v320
        %v322 = vsel %vm310, %v300, %v303
        %v323 = vsel %vm313, %v309, 1326507024
        %v324 = vsel %vm312, %v306, %v323
        %v325 = vsel %vm311, %v322, %v324
        %v326 = vshll.u32 %v286, 8
        %v327 = vmul.u32.u64.compose %v326, %v325
        %v328 = vextract.low.u32 %v327
        %v329 = vextract.high.u32 %v327
        %v330 = vmul.u32.u64.compose %v326, %v321
        %v331 = vextract.low.u32 %v330
        %v332 = vextract.high.u32 %v330
        %v333 = vmul.u32 %v326, %v317
        %v334 = vadd.s32 %v329, %v331
        %vm335 = vc.u32 %v329, %v331
        %v336 = vadd.s32 %v332, 1
        %v337 = vsel %vm335, %v336, %v332
        %v338 = vadd.s32 %v333, %v337
        %v339 = vadd.s32 %v338, 536870912
        %v340 = vshrl.u32 %v339, 30
        %v341 = vshll.u32 %v340, 30
        %v342 = vsub.s32 %v338, %v341
        %vm343 = vcmp.lt.s32.totalorder %v342, 0
        %v344 = vsub.s32 0, %v342
        %v345 = vsel %vm343, %v344, %v342
        %v346 = vclz %v345
        %v347 = vsub.s32 %v346, 2
        %vm348 = vcmp.gt.s32.totalorder 0, %v347
        %v349 = vsel %vm348, 0, %v347
        %v350 = vsub.s32 32, %v349
        %v351 = vshll.u32 %v342, %v349
        %v352 = vshrl.u32 %v334, %v350
        %v353 = vor.u32 %v351, %v352
        %v354 = vsub.s32 4294967266, %v349
        %v355 = vadd.s32 %v354, 127
        %v356 = vshll.u32 %v355, 23
        %v357 = vor.u32 4788187, %v356
        %v358 = vand.u32 2147483647, %v357
        %v360 = vcvt.s32.f32 %v353
        %v361 = vmul.f32 %v360, %v358
        %v362 = vxor.u32 %v361, 2147483648
        %v363 = vsel %vm280, %v362, %v361
        %v364 = vsub.s32 4, %v340
        %v365 = vsel %vm280, %v364, %v340
        %v366 = vsel %vm279, %v254, %v363
        %v367 = vsel %vm279, 0, %v365
        %v368 = vcosq.f32.pop %v366
        %v369 = vsinq.f32.pop %v366
        %vm370 = vweird.f32 %v254
        %v371 = vand.u32 %v367, 3
        %vm372 = vcmp.lt.s32.totalorder %v371, 2
        %vm373 = vcmp.eq.s32.totalorder %v371, 0
        %v374 = vxor.u32 %v369, 2147483648
        %v375 = vsel %vm373, %v368, %v374
        %vm376 = vcmp.eq.s32.totalorder %v371, 2
        %v377 = vxor.u32 %v368, 2147483648
        %v378 = vsel %vm376, %v377, %v369
        %v379 = vsel %vm372, %v375, %v378
        %v380 = vsel %vm370, nan, %v379
        %v381 = vmul.f32 %v212, %v380
        %v382 = vsub.f32 1.5707964, %v254
        %v383 = vand.u32 2147483647, %v382
        %vm384 = vcmp.le.f32.partialorder %v383, 0.7853982
        %vm385 = vcmp.lt.s32.totalorder %v382, 0
        %v386 = vand.u32 %v382, 2139095040
        %v387 = vshrl.u32 %v386, 23
        %v388 = vsub.s32 %v387, 127
        %v389 = vand.u32 2147483647, %v382
        %v390 = vand.u32 %v389, 8388607
        %v391 = vor.u32 %v390, 8388608
        %v392 = vsub.s32 0, %v391
        %v393 = vadd.s32 %v388, 1
        %vm394 = vcmp.gt.s32.totalorder %v393, 0
        %v395 = vsel %vm394, %v393, 0
        %v396 = vshrl.u32 %v395, 5
        %v397 = vand.u32 %v395, 31
        %v398 = vsub.s32 32, %v397
        %v399 = vshrl.u32 683565275, %v398
        %v400 = vshll.u32 683565275, %v397
        %v401 = vshrl.u32 2475754826, %v398
        %v402 = vor.u32 %v400, %v401
        %v403 = vshll.u32 2475754826, %v397
        %v404 = vshrl.u32 2131351028, %v398
        %v405 = vor.u32 %v403, %v404
        %v406 = vshll.u32 2131351028, %v397
        %v407 = vshrl.u32 2102212464, %v398
        %v408 = vor.u32 %v406, %v407
        %v409 = vshll.u32 2102212464, %v397
        %v410 = vshrl.u32 920167782, %v398
        %v411 = vor.u32 %v409, %v410
        %v412 = vshll.u32 920167782, %v397
        %v413 = vshrl.u32 1326507024, %v398
        %v414 = vor.u32 %v412, %v413
        %vm415 = vcmp.lt.s32.totalorder %v396, 1
        %vm416 = vcmp.lt.s32.totalorder %v396, 2
        %vm417 = vcmp.lt.s32.totalorder %v396, 3
        %vm418 = vcmp.lt.s32.totalorder %v396, 4
        %v419 = vsel %vm415, %v399, %v402
        %v420 = vsel %vm418, %v408, 2102212464
        %v421 = vsel %vm417, %v405, %v420
        %v422 = vsel %vm416, %v419, %v421
        %v423 = vsel %vm415, %v402, %v405
        %v424 = vsel %vm418, %v411, 920167782
        %v425 = vsel %vm417, %v408, %v424
        %v426 = vsel %vm416, %v423, %v425
        %v427 = vsel %vm415, %v405, %v408
        %v428 = vsel %vm418, %v414, 1326507024
        %v429 = vsel %vm417, %v411, %v428
        %v430 = vsel %vm416, %v427, %v429
        %v431 = vshll.u32 %v391, 8
        %v432 = vmul.u32.u64.compose %v431, %v430
        %v433 = vextract.low.u32 %v432
        %v434 = vextract.high.u32 %v432
        %v435 = vmul.u32.u64.compose %v431, %v426
        %v436 = vextract.low.u32 %v435
        %v437 = vextract.high.u32 %v435
        %v438 = vmul.u32 %v431, %v422
        %v439 = vadd.s32 %v434, %v436
        %vm440 = vc.u32 %v434, %v436
        %v441 = vadd.s32 %v437, 1
        %v442 = vsel %vm440, %v441, %v437
        %v443 = vadd.s32 %v438, %v442
        %v444 = vadd.s32 %v443, 536870912
        %v445 = vshrl.u32 %v444, 30
        %v446 = vshll.u32 %v445, 30
        %v447 = vsub.s32 %v443, %v446
        %vm448 = vcmp.lt.s32.totalorder %v447, 0
        %v449 = vsub.s32 0, %v447
        %v450 = vsel %vm448, %v449, %v447
        %v451 = vclz %v450
        %v452 = vsub.s32 %v451, 2
        %vm453 = vcmp.gt.s32.totalorder 0, %v452
        %v454 = vsel %vm453, 0, %v452
        %v455 = vsub.s32 32, %v454
        %v456 = vshll.u32 %v447, %v454
        %v457 = vshrl.u32 %v439, %v455
        %v458 = vor.u32 %v456, %v457
        %v459 = vsub.s32 4294967266, %v454
        %v460 = vadd.s32 %v459, 127
        %v461 = vshll.u32 %v460, 23
        %v462 = vor.u32 4788187, %v461
        %v463 = vand.u32 2147483647, %v462
        %v465 = vcvt.s32.f32 %v458
        %v466 = vmul.f32 %v465, %v463
        %v467 = vxor.u32 %v466, 2147483648
        %v468 = vsel %vm385, %v467, %v466
        %v469 = vsub.s32 4, %v445
        %v470 = vsel %vm385, %v469, %v445
        %v471 = vsel %vm384, %v382, %v468
        %v472 = vsel %vm384, 0, %v470
        %v473 = vcosq.f32.pop %v471
        %v474 = vsinq.f32.pop %v471
        %vm475 = vweird.f32 %v382
        %v476 = vand.u32 %v472, 3
        %vm477 = vcmp.lt.s32.totalorder %v476, 2
        %vm478 = vcmp.eq.s32.totalorder %v476, 0
        %v479 = vxor.u32 %v474, 2147483648
        %v480 = vsel %vm478, %v473, %v479
        %vm481 = vcmp.eq.s32.totalorder %v476, 2
        %v482 = vxor.u32 %v473, 2147483648
        %v483 = vsel %vm481, %v482, %v474
        %v484 = vsel %vm477, %v480, %v483
        %v485 = vsel %vm475, nan, %v484
        %v486 = vmul.f32 %v277, %v485
        %v487 = vsub.f32 %v381, %v486
        %v488 = vadd.f32 %v487, 1.0
        %v489 = vmul.f32 %v488, 0.5
        %490 = vst [vmem:[%s200] sm:$0xff] %v489
        %s491 = sand.u32 %s84, 1
        %s492 = scalar_lea.sflag [#allocation4], %s491
        %s493 = sand.u32 %s84, 1
        %s494 = smul.addr %s493, 8
        %s495 = scalar_lea.vmem [#allocation5], %s494
        %s496 = sand.u32 %s110, 1
        %s497 = scalar_lea.sflag [#allocation7], %s496
        %s498 = sand.u32 %s110, 1
        %s499 = scalar_lea.vmem [#allocation6], %s498
        // Predicated region
        $region33: #{tpu_custom_call.1} parent=27 // pred_check
          %p500 = pneg %p94
        $region34: #{tpu_custom_call.1} parent=27 // pred_check_branch
          %502 = sbr.rel (%p500) target = $region36
        $region35: #{tpu_custom_call.1} parent=27 // pred_region
          %s504 = ssub.s32 128, 128
          %505 = vsyncadd %s492, %s504
          %s506 = smul.addr %s24, 128
          %s507 = scalar_lea.hbm %s2, %s506
          %s509 = sshll.u32 %s495, 4
          %s510 = int_to_ptr.vmem [resolvable:$true] %s509
          %512 = dma.vmem_to_hbm [thread:$0]  %s510, 128, %s507, %s492
        $region36: #{tpu_custom_call.1} parent=27 // pred_fallthru
          _
        // Predicated region
        $region37: #{tpu_custom_call.1} parent=27 // pred_check
          %p513 = pneg %p120
        $region38: #{tpu_custom_call.1} parent=27 // pred_check_branch
          %515 = sbr.rel (%p513) target = $region40
        $region39: #{tpu_custom_call.1} parent=27 // pred_region
          %s517 = ssub.s32 16, 16
          %518 = vsyncadd %s497, %s517
          %s519 = smul.addr %s24, 16
          %s520 = scalar_lea.hbm %s3, %s519
          %s522 = sshll.u32 %s499, 4
          %s523 = int_to_ptr.vmem [resolvable:$true] %s522
          %525 = dma.vmem_to_hbm [thread:$0]  %s523, 16, %s520, %s497
        $region40: #{tpu_custom_call.1} parent=27 // pred_fallthru
          _
      $region28: #{tpu_custom_call.1} parent=5 // pred_fallthru
        _
      %p526 = scmp.le.s32.totalorder 2, %s19
      // Predicated region
      $region41: #{tpu_custom_call.1} parent=5 // pred_check
        %p527 = pneg %p526
      $region42: #{tpu_custom_call.1} parent=5 // pred_check_branch
        %529 = sbr.rel (%p527) target = $region44
      $region43: #{tpu_custom_call.1} parent=5 // pred_region
        %s530 = ssub.s32 %s19, 2
        // Predicated region
        $region45: #{tpu_custom_call.1} parent=43 // pred_check
          %p531 = pneg %p100
        $region46: #{tpu_custom_call.1} parent=43 // pred_check_branch
          %533 = sbr.rel (%p531) target = $region48
        $region47: #{tpu_custom_call.1} parent=43 // pred_region
          %s534 = sand.u32 %s85, 1
          %s535 = scalar_lea.sflag [#allocation4], %s534
          %s536 = sand.u32 %s85, 1
          %s537 = smul.addr %s536, 8
          %s538 = scalar_lea.vmem [#allocation5], %s537
          %539 = dma.done %s535, 128
        $region48: #{tpu_custom_call.1} parent=43 // pred_fallthru
          _
        // Predicated region
        $region49: #{tpu_custom_call.1} parent=43 // pred_check
          %p540 = pneg %p126
        $region50: #{tpu_custom_call.1} parent=43 // pred_check_branch
          %542 = sbr.rel (%p540) target = $region52
        $region51: #{tpu_custom_call.1} parent=43 // pred_region
          %s543 = sand.u32 %s111, 1
          %s544 = scalar_lea.sflag [#allocation7], %s543
          %s545 = sand.u32 %s111, 1
          %s546 = scalar_lea.vmem [#allocation6], %s545
          %547 = dma.done %s544, 16
        $region52: #{tpu_custom_call.1} parent=43 // pred_fallthru
          _
      $region44: #{tpu_custom_call.1} parent=5 // pred_fallthru
        _
    $region6: #{tpu_custom_call.1} parent=1 // loop_footer
      %s23 = sadd.s32 1, %s19
    $region7: #{tpu_custom_call.1} parent=1 // loop_footer_branch
      %18 = sbr.rel target = $region3
    $region8: #{tpu_custom_call.1} parent=1 // loop_exit
      _
    %548 = vsyncpa [#allocation3], 1
    %s549 = scalar_lea.sflag [#allocation3], 1
    %550 = vsyncpa %s549, 1
    %551 = vsyncpa [#allocation4], 1
    %s552 = scalar_lea.sflag [#allocation4], 1
    %553 = vsyncpa %s552, 1
    %554 = vsyncpa [#allocation7], 1
    %s555 = scalar_lea.sflag [#allocation7], 1
    %556 = vsyncpa %s555, 1

</llo_original>
